<compile_context>
chip_gen: v6e
topology: v6e:2x2x1
jax: 0.10.0
libtpu: 0.0.40
codegen_flags: <defaults>
</compile_context>

<pallas_src>
import math
from functools import partial, lru_cache

import jax
import jax.numpy as jnp
from jax.experimental import pallas as pl
from jax.experimental.pallas import tpu as pltpu

LANE = 128
_VMEM_LIMIT = 32 * 1024 * 1024  # raises v5e's 16 MiB scoped default; safe on v6e/v7x


# ---------------------------------------------------------------------------
# small helpers
# ---------------------------------------------------------------------------
def _round_up(x, m):
    return ((x + m - 1) // m) * m


def _pad_to(x, shape):
    pads = [(0, t - s) for s, t in zip(x.shape, shape)]
    return jnp.pad(x, pads)


@lru_cache(maxsize=1)
def _min_grid_steps():
    """>=2 grid steps on chips with 2 TensorCores (v7x / v4 / v5p) so both cores
    get work along the 'parallel' axis; 1 on single-TC chips (v5e / v6e)."""
    try:
        kind = jax.devices()[0].device_kind.lower()
    except Exception:
        return 1
    if "v7" in kind or "v4" in kind:
        return 2
    if "v5" in kind and "lite" not in kind and "v5e" not in kind:
        return 2  # v5p megacore
    return 1


def _pick_tile(M, tile_m, min_steps):
    """Return (tile, padded_M): tile is a multiple of 8, padded_M a multiple of
    tile, and padded_M // tile >= min_steps whenever M allows (>8 rows)."""
    m8 = _round_up(M, 8)
    cap = max(8, _round_up(-(-m8 // max(min_steps, 1)), 8))   # ceil-div then round to 8
    tm = min(tile_m, cap, m8)
    tm = max(8, (tm // 8) * 8)
    return tm, _round_up(m8, tm)


# ---------------------------------------------------------------------------
# Pallas kernels
# ---------------------------------------------------------------------------
def _input_proj_kernel(x_ref, w_ref, b_ref, o_ref):
    # 1x1 conv == channels-last matmul over flattened spatial positions.
    y = jnp.dot(x_ref[...], w_ref[...], preferred_element_type=jnp.float32)
    o_ref[...] = y + b_ref[...]


def _heads_kernel(x_ref, wc_ref, bc_ref, w1_ref, b1_ref, w2_ref, b2_ref,
                  w3_ref, b3_ref, logit_ref, box_ref):
    # Fused class_embed (Linear) + bbox_embed (3-layer MLP).  hs is read once
    # per tile.  Outputs are bf16 (lane-dense 128-wide stores); the bbox output
    # is PRE-sigmoid — sigmoid is applied on the sliced 4 real columns outside.
    xb = x_ref[...]                                   # bf16 [tm, Kp]

    logits = jnp.dot(xb, wc_ref[...], preferred_element_type=jnp.float32) + bc_ref[...]
    logit_ref[...] = logits.astype(logit_ref.dtype)

    h = jnp.dot(xb, w1_ref[...], preferred_element_type=jnp.float32) + b1_ref[...]
    h = jnp.maximum(h, 0.0)
    h = jnp.dot(h.astype(jnp.bfloat16), w2_ref[...],
                preferred_element_type=jnp.float32) + b2_ref[...]
    h = jnp.maximum(h, 0.0)
    y = jnp.dot(h.astype(jnp.bfloat16), w3_ref[...],
                preferred_element_type=jnp.float32) + b3_ref[...]
    box_ref[...] = y.astype(box_ref.dtype)


# ---------------------------------------------------------------------------
# Pallas wrappers (executed under jit -> pad/cast/slice fuse with neighbors)
# ---------------------------------------------------------------------------
def pallas_input_proj(src_flat, w_bf16, b_pad, *, tile_m=512, min_steps=None):
    """out = src_flat @ w + b  (128-lane-padded K and N; caller slices columns)."""
    if min_steps is None:
        min_steps = _min_grid_steps()
    M, _ = src_flat.shape
    Kp, Np = w_bf16.shape
    tm, M_pad = _pick_tile(M, tile_m, min_steps)
    x = _pad_to(src_flat, (M_pad, Kp)).astype(jnp.bfloat16)   # lane-dense bf16 stream
    out = pl.pallas_call(
        _input_proj_kernel,
        out_shape=jax.ShapeDtypeStruct((M_pad, Np), jnp.float32),
        grid=(M_pad // tm,),
        in_specs=[
            pl.BlockSpec((tm, Kp), lambda i: (i, 0)),
            pl.BlockSpec((Kp, Np), lambda i: (0, 0)),
            pl.BlockSpec((1, Np), lambda i: (0, 0)),
        ],
        out_specs=pl.BlockSpec((tm, Np), lambda i: (i, 0)),
        compiler_params=pltpu.CompilerParams(
            dimension_semantics=("parallel",),
            vmem_limit_bytes=_VMEM_LIMIT),
    )(x, w_bf16, b_pad.reshape(1, Np))
    return out[:M]


def pallas_heads(hs_flat, wc, bc, w1, b1, w2, b2, w3, b3, *, tile_m=128,
                 min_steps=None):
    """Fused class head + bbox MLP head.  Returns bf16 (logits_pad, box_raw_pad)
    with 128-lane-padded widths; caller slices columns and applies sigmoid."""
    if min_steps is None:
        min_steps = _min_grid_steps()
    M, _ = hs_flat.shape
    Kp, NCp = wc.shape
    Dp = w1.shape[1]
    NBp = w3.shape[1]
    tm, M_pad = _pick_tile(M, tile_m, min_steps)
    x = _pad_to(hs_flat, (M_pad, Kp)).astype(jnp.bfloat16)
    logits, box_raw = pl.pallas_call(
        _heads_kernel,
        out_shape=(jax.ShapeDtypeStruct((M_pad, NCp), jnp.bfloat16),
                   jax.ShapeDtypeStruct((M_pad, NBp), jnp.bfloat16)),
        grid=(M_pad // tm,),
        in_specs=[
            pl.BlockSpec((tm, Kp), lambda i: (i, 0)),
            pl.BlockSpec((Kp, NCp), lambda i: (0, 0)),
            pl.BlockSpec((1, NCp), lambda i: (0, 0)),
            pl.BlockSpec((Kp, Dp), lambda i: (0, 0)),
            pl.BlockSpec((1, Dp), lambda i: (0, 0)),
            pl.BlockSpec((Dp, Dp), lambda i: (0, 0)),
            pl.BlockSpec((1, Dp), lambda i: (0, 0)),
            pl.BlockSpec((Dp, NBp), lambda i: (0, 0)),
            pl.BlockSpec((1, NBp), lambda i: (0, 0)),
        ],
        out_specs=(pl.BlockSpec((tm, NCp), lambda i: (i, 0)),
                   pl.BlockSpec((tm, NBp), lambda i: (i, 0))),
        compiler_params=pltpu.CompilerParams(
            dimension_semantics=("parallel",),
            vmem_limit_bytes=_VMEM_LIMIT),
    )(x, wc, bc.reshape(1, NCp), w1, b1.reshape(1, Dp),
      w2, b2.reshape(1, Dp), w3, b3.reshape(1, NBp))
    return logits[:M], box_raw[:M]


# ---------------------------------------------------------------------------
# Deterministic parameter init (shapes follow DETR.__init__)
# ---------------------------------------------------------------------------
def init_detr_params(key, *, num_channels, hidden_dim, num_classes, num_queries):
    def lin(k, fan_in, fan_out):
        kw, kb = jax.random.split(k)
        bound = 1.0 / math.sqrt(fan_in)
        w = jax.random.uniform(kw, (fan_in, fan_out), jnp.float32, -bound, bound)
        b = jax.random.uniform(kb, (fan_out,), jnp.float32, -bound, bound)
        return w, b

    ks = jax.random.split(key, 8)
    p = {}
    # nn.Conv2d(num_channels, hidden_dim, kernel_size=1) -> [C_in, D] matmul weight
    p["input_proj_w"], p["input_proj_b"] = lin(ks[0], num_channels, hidden_dim)
    # nn.Linear(hidden_dim, num_classes + 1)
    p["class_w"], p["class_b"] = lin(ks[1], hidden_dim, num_classes + 1)
    # MLP(hidden_dim, hidden_dim, 4, 3)
    p["bbox_w1"], p["bbox_b1"] = lin(ks[2], hidden_dim, hidden_dim)
    p["bbox_w2"], p["bbox_b2"] = lin(ks[3], hidden_dim, hidden_dim)
    p["bbox_w3"], p["bbox_b3"] = lin(ks[4], hidden_dim, 4)
    # nn.Embedding(num_queries, hidden_dim)
    p["query_embed"] = jax.random.normal(ks[5], (num_queries, hidden_dim), jnp.float32)
    # backbone stand-in projection (external module in real DETR)
    p["backbone_w"], p["backbone_b"] = lin(ks[6], 3, num_channels)
    return p


def prepare_pallas_params(p):
    """Runs ONCE at init (hoisted out of the jitted forward).  Zero-pads every
    matmul dim to a multiple of 128 (lane-dense K and N) and casts matmul
    weights to bf16; biases stay f32.  Zero padding keeps the math identical in
    the real columns; padded columns are sliced off after the kernels.
    TODO(synk): at real DETR (D=256) keep Dp=256 rather than 128 multiples for
    full MXU-width tiles on v6e/v7x."""
    Cin, D = p["input_proj_w"].shape
    NC = p["class_w"].shape[1]
    Cinp = _round_up(Cin, LANE)
    Dp = _round_up(D, LANE)
    NCp = _round_up(NC, LANE)
    NBp = _round_up(4, LANE)

    def w(x, r, c):
        return _pad_to(x, (r, c)).astype(jnp.bfloat16)

    def b(x, n):
        return _pad_to(x, (n,)).astype(jnp.float32)

    return {
        "input_proj_w": w(p["input_proj_w"], Cinp, Dp),
        "input_proj_b": b(p["input_proj_b"], Dp),
        "class_w": w(p["class_w"], Dp, NCp),
        "class_b": b(p["class_b"], NCp),
        "bbox_w1": w(p["bbox_w1"], Dp, Dp),
        "bbox_b1": b(p["bbox_b1"], Dp),
        "bbox_w2": w(p["bbox_w2"], Dp, Dp),
        "bbox_b2": b(p["bbox_b2"], Dp),
        "bbox_w3": w(p["bbox_w3"], Dp, NBp),
        "bbox_b3": b(p["bbox_b3"], NBp),
    }


# ---------------------------------------------------------------------------
# Stand-ins for injected external modules (channels-last)
# ---------------------------------------------------------------------------
def backbone_stub(params, samples, mask, hidden_dim):
    # TODO(synk): the real DETR backbone (backbone.py, ResNet + position
    # encoding) is an external injected module; this is a deterministic
    # stand-in (2x2 avg-pool + 1x1 channel projection + sine-style pos emb),
    # emitted channels-last so the Pallas input_proj needs no transposes.
    B, C, H, W = samples.shape
    Hf, Wf = H // 2, W // 2
    x = samples.reshape(B, C, Hf, 2, Wf, 2).mean(axis=(3, 5))        # [B,3,Hf,Wf]
    x = x.transpose(0, 2, 3, 1)                                      # [B,Hf,Wf,3]
    src = jnp.einsum("bhwc,cd->bhwd", x, params["backbone_w"]) + params["backbone_b"]
    mask_f = mask.reshape(B, Hf, 2, Wf, 2)[:, :, 0, :, 0]            # [B,Hf,Wf]
    pos_idx = jnp.arange(Hf * Wf, dtype=jnp.float32).reshape(1, Hf, Wf, 1)
    chan = jnp.arange(hidden_dim, dtype=jnp.float32).reshape(1, 1, 1, hidden_dim)
    pos = jnp.sin(pos_idx / (10.0 ** (chan / hidden_dim)))
    pos = jnp.broadcast_to(pos, (B, Hf, Wf, hidden_dim))             # [B,Hf,Wf,D]
    return src, mask_f, pos


def transformer_stub(mem, pos, key_mask, query_embed, num_layers=2):
    # TODO(synk): the real DETR transformer (transformer.py) is an external
    # injected module; this plain-JAX stand-in runs per-layer single-head
    # cross-attention from the object queries to the memory, using DETR's
    # convention k = memory + pos, v = memory (pos on keys only, not values),
    # and returns hs of shape [num_decoder_layers, B, num_queries, d_model].
    # At real DETR sizes this would become a Pallas flash-attention kernel and
    # the input_proj output would be consumed directly from VMEM (no HBM
    # round-trip of the memory tensor).
    B, HW, D = mem.shape
    scale = 1.0 / jnp.sqrt(jnp.float32(D))
    k = mem + pos
    q = jnp.broadcast_to(query_embed[None], (B,) + query_embed.shape)   # [B,Q,D]
    hs = []
    for _ in range(num_layers):
        scores = jnp.einsum("bqd,bkd->bqk", q, k) * scale
        scores = jnp.where(key_mask[:, None, :], -1e9, scores)
        attn = jax.nn.softmax(scores, axis=-1)
        q = q + jnp.einsum("bqk,bkd->bqd", attn, mem)
        hs.append(q)
    return jnp.stack(hs, axis=0)                                         # [L,B,Q,D]


# ---------------------------------------------------------------------------
# DETR forward (jitted; padded/cast weights `pp` prepared once outside)
# ---------------------------------------------------------------------------
@partial(jax.jit, static_argnames=("hidden_dim", "num_decoder_layers", "aux_loss"))
def detr_forward(params, pp, samples, mask, *, hidden_dim, num_decoder_layers=2,
                 aux_loss=False):
    D = hidden_dim
    NC = params["class_w"].shape[1]

    # backbone (external) -> channels-last features, mask, pos
    src, mask_f, pos = backbone_stub(params, samples, mask, hidden_dim)
    B, Hf, Wf, Cin = src.shape
    M = B * Hf * Wf

    # self.input_proj(src): 1x1 conv == matmul over flattened spatial positions
    # (channels-last, lane-dense bf16 input stream, lane-dense f32 output).
    src_flat = src.reshape(M, Cin)
    mem_pad = pallas_input_proj(src_flat, pp["input_proj_w"], pp["input_proj_b"])
    mem = mem_pad[:, :D].reshape(B, Hf * Wf, D)

    # hs = self.transformer(self.input_proj(src), mask, query_embed.weight, pos)[0]
    key_mask = mask_f.reshape(B, Hf * Wf)
    pos_flat = pos.reshape(B, Hf * Wf, D)
    hs = transformer_stub(mem, pos_flat, key_mask, params["query_embed"],
                          num_layers=num_decoder_layers)                 # [L,B,Q,D]
    L, B2, Q, _ = hs.shape
    hs_flat = hs.reshape(L * B2 * Q, D)

    # Fused: outputs_class = self.class_embed(hs);
    #        outputs_coord = self.bbox_embed(hs).sigmoid()
    logits_pad, box_raw_pad = pallas_heads(
        hs_flat,
        pp["class_w"], pp["class_b"],
        pp["bbox_w1"], pp["bbox_b1"],
        pp["bbox_w2"], pp["bbox_b2"],
        pp["bbox_w3"], pp["bbox_b3"],
    )
    outputs_class = logits_pad[:, :NC].astype(jnp.float32).reshape(L, B2, Q, NC)
    # sigmoid applied only on the 4 real columns (equivalent to in-kernel sigmoid)
    outputs_coord = jax.nn.sigmoid(
        box_raw_pad[:, :4].astype(jnp.float32)).reshape(L, B2, Q, 4)

    out = {"pred_logits": outputs_class[-1], "pred_boxes": outputs_coord[-1]}
    if aux_loss:
        out["aux_outputs"] = [
            {"pred_logits": a, "pred_boxes": b}
            for a, b in zip(outputs_class[:-1], outputs_coord[:-1])
        ]
    return out


# ---------------------------------------------------------------------------
if __name__ == "__main__":
    B, H, W = 2, 16, 16
    NUM_CHANNELS = 8      # backbone.num_channels
    HIDDEN_DIM = 32       # transformer.d_model
    NUM_CLASSES = 6
    NUM_QUERIES = 8
    NUM_DEC_LAYERS = 2

    key = jax.random.PRNGKey(0)
    kp, kx = jax.random.split(key)
    params = init_detr_params(
        kp, num_channels=NUM_CHANNELS, hidden_dim=HIDDEN_DIM,
        num_classes=NUM_CLASSES, num_queries=NUM_QUERIES)
    # Hoisted out of the forward path: pad + bf16-cast the weights once.
    pp = prepare_pallas_params(params)
    pp = jax.tree_util.tree_map(jax.block_until_ready, pp)

    samples = jax.random.normal(kx, (B, 3, H, W), jnp.float32)   # NestedTensor.tensor
    mask = jnp.zeros((B, H, W), dtype=bool)                       # NestedTensor.mask

    out = detr_forward(params, pp, samples, mask,
                       hidden_dim=HIDDEN_DIM,
                       num_decoder_layers=NUM_DEC_LAYERS,
                       aux_loss=False)
    jax.block_until_ready(out)

    assert out["pred_logits"].shape == (B, NUM_QUERIES, NUM_CLASSES + 1)
    assert out["pred_boxes"].shape == (B, NUM_QUERIES, 4)
    assert bool(jnp.all(out["pred_boxes"] >= 0.0)) and bool(jnp.all(out["pred_boxes"] <= 1.0))
    assert bool(jnp.all(jnp.isfinite(out["pred_logits"])))
    print("KERNEL_OK")
</pallas_src>

<mosaic_0001>
module attributes {stable_mosaic.version = 11 : i64} {
  func.func @_input_proj_kernel(%arg0: i32, %arg1: memref<128x128xbf16, #tpu.memory_space<vmem>>, %arg2: memref<128x128xbf16, #tpu.memory_space<vmem>>, %arg3: memref<1x128xf32, #tpu.memory_space<vmem>>, %arg4: memref<128x128xf32, #tpu.memory_space<vmem>>) attributes {dimension_semantics = [#tpu.dimension_semantics<parallel>], iteration_bounds = array<i64: 1>, scalar_prefetch = 0 : i64, scratch_operands = 0 : i64, tpu.core_type = #tpu.core_type<tc>, window_params = [{transform_indices = @transform_0, window_bounds = array<i64: 128, 128>}, {pipeline_mode = #tpu.pipeline_mode<synchronous>, transform_indices = @transform_1, window_bounds = array<i64: 128, 128>}, {pipeline_mode = #tpu.pipeline_mode<synchronous>, transform_indices = @transform_2, window_bounds = array<i64: 1, 128>}, {transform_indices = @transform_3, window_bounds = array<i64: 128, 128>}]} {
    %c0 = arith.constant 0 : index
    %c0_0 = arith.constant 0 : index
    %0 = vector.load %arg1[%c0, %c0_0] : memref<128x128xbf16, #tpu.memory_space<vmem>>, vector<128x128xbf16>
    %c0_1 = arith.constant 0 : index
    %c0_2 = arith.constant 0 : index
    %1 = vector.load %arg2[%c0_1, %c0_2] : memref<128x128xbf16, #tpu.memory_space<vmem>>, vector<128x128xbf16>
    %cst = arith.constant dense<0.000000e+00> : vector<128x128xf32>
    %2 = tpu.matmul %0, %1, %cst {dimension_numbers = #tpu.dot_dimension_numbers<[1], [0], [0], [1], [0, 0, 1, 1], [], []>} : vector<128x128xbf16>, vector<128x128xbf16>, vector<128x128xf32> -> vector<128x128xf32>
    %c0_3 = arith.constant 0 : index
    %c0_4 = arith.constant 0 : index
    %3 = vector.load %arg3[%c0_3, %c0_4] : memref<1x128xf32, #tpu.memory_space<vmem>>, vector<1x128xf32>
    %4 = vector.broadcast %3 : vector<1x128xf32> to vector<128x128xf32>
    %5 = arith.addf %2, %4 : vector<128x128xf32>
    %c0_5 = arith.constant 0 : index
    %c0_6 = arith.constant 0 : index
    %6 = vector.load %arg4[%c0_5, %c0_6] : memref<128x128xf32, #tpu.memory_space<vmem>>, vector<128x128xf32>
    tpu.vector_store %arg4[%c0_5, %c0_6], %5 {strides = array<i32>} : memref<128x128xf32, #tpu.memory_space<vmem>>, vector<128x128xf32>,
    return
  }
  func.func @transform_0(%arg0: i32) -> (i32, i32) {
    %c0_i32 = arith.constant 0 : i32
    %c0_i32_0 = arith.constant 0 : i32
    return %arg0, %c0_i32 : i32, i32
  }
  func.func @transform_1(%arg0: i32) -> (i32, i32) {
    %c0_i32 = arith.constant 0 : i32
    %c0_i32_0 = arith.constant 0 : i32
    %c0_i32_1 = arith.constant 0 : i32
    return %c0_i32, %c0_i32_0 : i32, i32
  }
  func.func @transform_2(%arg0: i32) -> (i32, i32) {
    %c0_i32 = arith.constant 0 : i32
    %c0_i32_0 = arith.constant 0 : i32
    %c0_i32_1 = arith.constant 0 : i32
    return %c0_i32, %c0_i32_0 : i32, i32
  }
  func.func @transform_3(%arg0: i32) -> (i32, i32) {
    %c0_i32 = arith.constant 0 : i32
    %c0_i32_0 = arith.constant 0 : i32
    return %arg0, %c0_i32 : i32, i32
  }
}

module attributes {stable_mosaic.version = 11 : i64} {
  func.func @_heads_kernel(%arg0: i32, %arg1: memref<32x128xbf16, #tpu.memory_space<vmem>>, %arg2: memref<128x128xbf16, #tpu.memory_space<vmem>>, %arg3: memref<1x128xf32, #tpu.memory_space<vmem>>, %arg4: memref<128x128xbf16, #tpu.memory_space<vmem>>, %arg5: memref<1x128xf32, #tpu.memory_space<vmem>>, %arg6: memref<128x128xbf16, #tpu.memory_space<vmem>>, %arg7: memref<1x128xf32, #tpu.memory_space<vmem>>, %arg8: memref<128x128xbf16, #tpu.memory_space<vmem>>, %arg9: memref<1x128xf32, #tpu.memory_space<vmem>>, %arg10: memref<32x128xbf16, #tpu.memory_space<vmem>>, %arg11: memref<32x128xbf16, #tpu.memory_space<vmem>>) attributes {dimension_semantics = [#tpu.dimension_semantics<parallel>], iteration_bounds = array<i64: 1>, scalar_prefetch = 0 : i64, scratch_operands = 0 : i64, tpu.core_type = #tpu.core_type<tc>, window_params = [{transform_indices = @transform_0, window_bounds = array<i64: 32, 128>}, {pipeline_mode = #tpu.pipeline_mode<synchronous>, transform_indices = @transform_1, window_bounds = array<i64: 128, 128>}, {pipeline_mode = #tpu.pipeline_mode<synchronous>, transform_indices = @transform_2, window_bounds = array<i64: 1, 128>}, {pipeline_mode = #tpu.pipeline_mode<synchronous>, transform_indices = @transform_3, window_bounds = array<i64: 128, 128>}, {pipeline_mode = #tpu.pipeline_mode<synchronous>, transform_indices = @transform_4, window_bounds = array<i64: 1, 128>}, {pipeline_mode = #tpu.pipeline_mode<synchronous>, transform_indices = @transform_5, window_bounds = array<i64: 128, 128>}, {pipeline_mode = #tpu.pipeline_mode<synchronous>, transform_indices = @transform_6, window_bounds = array<i64: 1, 128>}, {pipeline_mode = #tpu.pipeline_mode<synchronous>, transform_indices = @transform_7, window_bounds = array<i64: 128, 128>}, {pipeline_mode = #tpu.pipeline_mode<synchronous>, transform_indices = @transform_8, window_bounds = array<i64: 1, 128>}, {transform_indices = @transform_9, window_bounds = array<i64: 32, 128>}, {transform_indices = @transform_10, window_bounds = array<i64: 32, 128>}]} {
    %c0 = arith.constant 0 : index
    %c0_0 = arith.constant 0 : index
    %0 = vector.load %arg1[%c0, %c0_0] : memref<32x128xbf16, #tpu.memory_space<vmem>>, vector<32x128xbf16>
    %c0_1 = arith.constant 0 : index
    %c0_2 = arith.constant 0 : index
    %1 = vector.load %arg2[%c0_1, %c0_2] : memref<128x128xbf16, #tpu.memory_space<vmem>>, vector<128x128xbf16>
    %cst = arith.constant dense<0.000000e+00> : vector<32x128xf32>
    %2 = tpu.matmul %0, %1, %cst {dimension_numbers = #tpu.dot_dimension_numbers<[1], [0], [0], [1], [0, 0, 1, 1], [], []>} : vector<32x128xbf16>, vector<128x128xbf16>, vector<32x128xf32> -> vector<32x128xf32>
    %c0_3 = arith.constant 0 : index
    %c0_4 = arith.constant 0 : index
    %3 = vector.load %arg3[%c0_3, %c0_4] : memref<1x128xf32, #tpu.memory_space<vmem>>, vector<1x128xf32>
    %4 = vector.broadcast %3 : vector<1x128xf32> to vector<32x128xf32>
    %5 = arith.addf %2, %4 : vector<32x128xf32>
    %6 = arith.truncf %5 : vector<32x128xf32> to vector<32x128xbf16>
    %c0_5 = arith.constant 0 : index
    %c0_6 = arith.constant 0 : index
    %7 = vector.load %arg10[%c0_5, %c0_6] : memref<32x128xbf16, #tpu.memory_space<vmem>>, vector<32x128xbf16>
    tpu.vector_store %arg10[%c0_5, %c0_6], %6 {strides = array<i32>} : memref<32x128xbf16, #tpu.memory_space<vmem>>, vector<32x128xbf16>,
    %c0_7 = arith.constant 0 : index
    %c0_8 = arith.constant 0 : index
    %8 = vector.load %arg4[%c0_7, %c0_8] : memref<128x128xbf16, #tpu.memory_space<vmem>>, vector<128x128xbf16>
    %cst_9 = arith.constant dense<0.000000e+00> : vector<32x128xf32>
    %9 = tpu.matmul %0, %8, %cst_9 {dimension_numbers = #tpu.dot_dimension_numbers<[1], [0], [0], [1], [0, 0, 1, 1], [], []>} : vector<32x128xbf16>, vector<128x128xbf16>, vector<32x128xf32> -> vector<32x128xf32>
    %c0_10 = arith.constant 0 : index
    %c0_11 = arith.constant 0 : index
    %10 = vector.load %arg5[%c0_10, %c0_11] : memref<1x128xf32, #tpu.memory_space<vmem>>, vector<1x128xf32>
    %11 = vector.broadcast %10 : vector<1x128xf32> to vector<32x128xf32>
    %12 = arith.addf %9, %11 : vector<32x128xf32>
    %cst_12 = arith.constant 0.000000e+00 : f32
    %13 = vector.broadcast %cst_12 : f32 to vector<32x128xf32>
    %14 = arith.maximumf %12, %13 : vector<32x128xf32>
    %15 = arith.truncf %14 : vector<32x128xf32> to vector<32x128xbf16>
    %c0_13 = arith.constant 0 : index
    %c0_14 = arith.constant 0 : index
    %16 = vector.load %arg6[%c0_13, %c0_14] : memref<128x128xbf16, #tpu.memory_space<vmem>>, vector<128x128xbf16>
    %cst_15 = arith.constant dense<0.000000e+00> : vector<32x128xf32>
    %17 = tpu.matmul %15, %16, %cst_15 {dimension_numbers = #tpu.dot_dimension_numbers<[1], [0], [0], [1], [0, 0, 1, 1], [], []>} : vector<32x128xbf16>, vector<128x128xbf16>, vector<32x128xf32> -> vector<32x128xf32>
    %c0_16 = arith.constant 0 : index
    %c0_17 = arith.constant 0 : index
    %18 = vector.load %arg7[%c0_16, %c0_17] : memref<1x128xf32, #tpu.memory_space<vmem>>, vector<1x128xf32>
    %19 = vector.broadcast %18 : vector<1x128xf32> to vector<32x128xf32>
    %20 = arith.addf %17, %19 : vector<32x128xf32>
    %cst_18 = arith.constant 0.000000e+00 : f32
    %21 = vector.broadcast %cst_18 : f32 to vector<32x128xf32>
    %22 = arith.maximumf %20, %21 : vector<32x128xf32>
    %23 = arith.truncf %22 : vector<32x128xf32> to vector<32x128xbf16>
    %c0_19 = arith.constant 0 : index
    %c0_20 = arith.constant 0 : index
    %24 = vector.load %arg8[%c0_19, %c0_20] : memref<128x128xbf16, #tpu.memory_space<vmem>>, vector<128x128xbf16>
    %cst_21 = arith.constant dense<0.000000e+00> : vector<32x128xf32>
    %25 = tpu.matmul %23, %24, %cst_21 {dimension_numbers = #tpu.dot_dimension_numbers<[1], [0], [0], [1], [0, 0, 1, 1], [], []>} : vector<32x128xbf16>, vector<128x128xbf16>, vector<32x128xf32> -> vector<32x128xf32>
    %c0_22 = arith.constant 0 : index
    %c0_23 = arith.constant 0 : index
    %26 = vector.load %arg9[%c0_22, %c0_23] : memref<1x128xf32, #tpu.memory_space<vmem>>, vector<1x128xf32>
    %27 = vector.broadcast %26 : vector<1x128xf32> to vector<32x128xf32>
    %28 = arith.addf %25, %27 : vector<32x128xf32>
    %29 = arith.truncf %28 : vector<32x128xf32> to vector<32x128xbf16>
    %c0_24 = arith.constant 0 : index
    %c0_25 = arith.constant 0 : index
    %30 = vector.load %arg11[%c0_24, %c0_25] : memref<32x128xbf16, #tpu.memory_space<vmem>>, vector<32x128xbf16>
    tpu.vector_store %arg11[%c0_24, %c0_25], %29 {strides = array<i32>} : memref<32x128xbf16, #tpu.memory_space<vmem>>, vector<32x128xbf16>,
    return
  }
  func.func @transform_0(%arg0: i32) -> (i32, i32) {
    %c0_i32 = arith.constant 0 : i32
    %c0_i32_0 = arith.constant 0 : i32
    return %arg0, %c0_i32 : i32, i32
  }
  func.func @transform_1(%arg0: i32) -> (i32, i32) {
    %c0_i32 = arith.constant 0 : i32
    %c0_i32_0 = arith.constant 0 : i32
    %c0_i32_1 = arith.constant 0 : i32
    return %c0_i32, %c0_i32_0 : i32, i32
  }
  func.func @transform_2(%arg0: i32) -> (i32, i32) {
    %c0_i32 = arith.constant 0 : i32
    %c0_i32_0 = arith.constant 0 : i32
    %c0_i32_1 = arith.constant 0 : i32
    return %c0_i32, %c0_i32_0 : i32, i32
  }
  func.func @transform_3(%arg0: i32) -> (i32, i32) {
    %c0_i32 = arith.constant 0 : i32
    %c0_i32_0 = arith.constant 0 : i32
    %c0_i32_1 = arith.constant 0 : i32
    return %c0_i32, %c0_i32_0 : i32, i32
  }
  func.func @transform_4(%arg0: i32) -> (i32, i32) {
    %c0_i32 = arith.constant 0 : i32
    %c0_i32_0 = arith.constant 0 : i32
    %c0_i32_1 = arith.constant 0 : i32
    return %c0_i32, %c0_i32_0 : i32, i32
  }
  func.func @transform_5(%arg0: i32) -> (i32, i32) {
    %c0_i32 = arith.constant 0 : i32
    %c0_i32_0 = arith.constant 0 : i32
    %c0_i32_1 = arith.constant 0 : i32
    return %c0_i32, %c0_i32_0 : i32, i32
  }
  func.func @transform_6(%arg0: i32) -> (i32, i32) {
    %c0_i32 = arith.constant 0 : i32
    %c0_i32_0 = arith.constant 0 : i32
    %c0_i32_1 = arith.constant 0 : i32
    return %c0_i32, %c0_i32_0 : i32, i32
  }
  func.func @transform_7(%arg0: i32) -> (i32, i32) {
    %c0_i32 = arith.constant 0 : i32
    %c0_i32_0 = arith.constant 0 : i32
    %c0_i32_1 = arith.constant 0 : i32
    return %c0_i32, %c0_i32_0 : i32, i32
  }
  func.func @transform_8(%arg0: i32) -> (i32, i32) {
    %c0_i32 = arith.constant 0 : i32
    %c0_i32_0 = arith.constant 0 : i32
    %c0_i32_1 = arith.constant 0 : i32
    return %c0_i32, %c0_i32_0 : i32, i32
  }
  func.func @transform_9(%arg0: i32) -> (i32, i32) {
    %c0_i32 = arith.constant 0 : i32
    %c0_i32_0 = arith.constant 0 : i32
    return %arg0, %c0_i32 : i32, i32
  }
  func.func @transform_10(%arg0: i32) -> (i32, i32) {
    %c0_i32 = arith.constant 0 : i32
    %c0_i32_0 = arith.constant 0 : i32
    return %arg0, %c0_i32 : i32, i32
  }
}

</mosaic_0001>

<llo_original>
// kernel: detr_forward.2
$region0: #{detr_forward.2}
  #allocation0 [shape = 'u32[]', space=smem, size = 0x4, offset = 0x4, fixed_abs, tag = 'smem constant byte address 0x4 - core index']
  #allocation1 [shape = 'u32[144,128]{1,0:T(1,128)}', space=vmem, size = 0x12000, scoped, tag = 'internal scratch']
  %s0 = inlined_call_operand.vmem [shape: bf16[128,128], index: 0, kind: input, shape index: {}]
  %s1 = inlined_call_operand.vmem [shape: bf16[128,128], index: 1, kind: input, shape index: {}]
  %s2 = inlined_call_operand.vmem [shape: f32[1,128], index: 2, kind: input, shape index: {}]
  %s3 = inlined_call_operand.vmem [shape: f32[128,128], index: 3, kind: output, shape index: {}]
  %s4 = sld [smem:[#allocation0]]
  $region22: #{detr_forward.2} parent=0
    _
  %s6 = ssub.s32 1, %s4
  %s7 = scalar_select 0, %s6, %s4
  // Predicated region
  $region2: #{detr_forward.2} parent=0 // pred_check
    _
  $region3: #{detr_forward.2} parent=0 // pred_check_branch
    %9 = sbr.rel (0) target = $region5
  $region4: #{detr_forward.2} parent=0 // pred_region
    _
  $region5: #{detr_forward.2} parent=0 // pred_fallthru
    _
  // Predicated region
  $region6: #{detr_forward.2} parent=0 // pred_check
    _
  $region7: #{detr_forward.2} parent=0 // pred_check_branch
    %11 = sbr.rel (0) target = $region9
  $region8: #{detr_forward.2} parent=0 // pred_region
    _
  $region9: #{detr_forward.2} parent=0 // pred_fallthru
    _
  // Predicated region
  $region10: #{detr_forward.2} parent=0 // pred_check
    _
  $region11: #{detr_forward.2} parent=0 // pred_check_branch
    %13 = sbr.rel (0) target = $region13
  $region12: #{detr_forward.2} parent=0 // pred_region
    _
  $region13: #{detr_forward.2} parent=0 // pred_fallthru
    _
  %v15 = vld [vmem:[%s0] sm:$0xf]
  %v16 = vld [vmem:[%s0 + $0x4] sm:$0xf]
  %v17 = vld [vmem:[%s0 + $0x8] sm:$0xf]
  %v18 = vld [vmem:[%s0 + $0xc] sm:$0xf]
  %v19 = vld [vmem:[%s0 + $0x10] sm:$0xf]
  %v20 = vld [vmem:[%s0 + $0x14] sm:$0xf]
  %v21 = vld [vmem:[%s0 + $0x18] sm:$0xf]
  %v22 = vld [vmem:[%s0 + $0x1c] sm:$0xf]
  %v23 = vld [vmem:[%s0 + $0x20] sm:$0xf]
  %v24 = vld [vmem:[%s0 + $0x24] sm:$0xf]
  %v25 = vld [vmem:[%s0 + $0x28] sm:$0xf]
  %v26 = vld [vmem:[%s0 + $0x2c] sm:$0xf]
  %v27 = vld [vmem:[%s0 + $0x30] sm:$0xf]
  %v28 = vld [vmem:[%s0 + $0x34] sm:$0xf]
  %v29 = vld [vmem:[%s0 + $0x38] sm:$0xf]
  %v30 = vld [vmem:[%s0 + $0x3c] sm:$0xf]
  %v31 = vld [vmem:[%s1] sm:$0xf]
  %v32 = vld [vmem:[%s1 + $0x4] sm:$0xf]
  %v33 = vld [vmem:[%s1 + $0x8] sm:$0xf]
  %v34 = vld [vmem:[%s1 + $0xc] sm:$0xf]
  %v35 = vld [vmem:[%s1 + $0x10] sm:$0xf]
  %v36 = vld [vmem:[%s1 + $0x14] sm:$0xf]
  %v37 = vld [vmem:[%s1 + $0x18] sm:$0xf]
  %v38 = vld [vmem:[%s1 + $0x1c] sm:$0xf]
  %v39 = vld [vmem:[%s1 + $0x20] sm:$0xf]
  %v40 = vld [vmem:[%s1 + $0x24] sm:$0xf]
  %v41 = vld [vmem:[%s1 + $0x28] sm:$0xf]
  %v42 = vld [vmem:[%s1 + $0x2c] sm:$0xf]
  %v43 = vld [vmem:[%s1 + $0x30] sm:$0xf]
  %v44 = vld [vmem:[%s1 + $0x34] sm:$0xf]
  %v45 = vld [vmem:[%s1 + $0x38] sm:$0xf]
  %v46 = vld [vmem:[%s1 + $0x3c] sm:$0xf]
  %v47 = vld [vmem:[%s2] sm:$0x1]
  %v49 = vlaneseq
  %v50 = vshrl.u32 %v49, 7
  %v51 = vsub.s32 0, %v50
  %v52 = vrot.slane %v47, %v51
  %v70 = vunpack.c.l.b16 %v15
  %v71 = vunpack.c.l.b16 %v16
  %v72 = vunpack.c.l.b16 %v17
  %v73 = vunpack.c.l.b16 %v18
  %v74 = vunpack.c.l.b16 %v19
  %v75 = vunpack.c.l.b16 %v20
  %v76 = vunpack.c.l.b16 %v21
  %v77 = vunpack.c.l.b16 %v22
  %v78 = vunpack.c.l.b16 %v23
  %v79 = vunpack.c.l.b16 %v24
  %v80 = vunpack.c.l.b16 %v25
  %v81 = vunpack.c.l.b16 %v26
  %v82 = vunpack.c.l.b16 %v27
  %v83 = vunpack.c.l.b16 %v28
  %v84 = vunpack.c.l.b16 %v29
  %v85 = vunpack.c.l.b16 %v30
  %v86 = vpack.c.b16 %v71, %v70
  %v87 = vpack.c.b16 %v73, %v72
  %v88 = vpack.c.b16 %v75, %v74
  %v89 = vpack.c.b16 %v77, %v76
  %v90 = vpack.c.b16 %v79, %v78
  %v91 = vpack.c.b16 %v81, %v80
  %v92 = vpack.c.b16 %v83, %v82
  %v93 = vpack.c.b16 %v85, %v84
  %v118 = vunpack.c.l.b16 %v31
  %v119 = vunpack.c.l.b16 %v32
  %v120 = vunpack.c.l.b16 %v33
  %v121 = vunpack.c.l.b16 %v34
  %v122 = vunpack.c.l.b16 %v35
  %v123 = vunpack.c.l.b16 %v36
  %v124 = vunpack.c.l.b16 %v37
  %v125 = vunpack.c.l.b16 %v38
  %v126 = vunpack.c.l.b16 %v39
  %v127 = vunpack.c.l.b16 %v40
  %v128 = vunpack.c.l.b16 %v41
  %v129 = vunpack.c.l.b16 %v42
  %v130 = vunpack.c.l.b16 %v43
  %v131 = vunpack.c.l.b16 %v44
  %v132 = vunpack.c.l.b16 %v45
  %v133 = vunpack.c.l.b16 %v46
  %v134 = vpack.c.b16 %v119, %v118
  %v135 = vpack.c.b16 %v121, %v120
  %v136 = vpack.c.b16 %v123, %v122
  %v137 = vpack.c.b16 %v125, %v124
  %v138 = vpack.c.b16 %v127, %v126
  %v139 = vpack.c.b16 %v129, %v128
  %v140 = vpack.c.b16 %v131, %v130
  %v141 = vpack.c.b16 %v133, %v132
  %150 = vmatprep.subr.bf16.mxu0 0
  %151 = vmatpush1.bf16.msra.mxu0 %v141
  %152 = vmatprep.subr.bf16.mxu0 0
  %153 = vmatpush1.bf16.msra.mxu0 %v140
  %154 = vmatprep.subr.bf16.mxu0 0
  %155 = vmatpush1.bf16.msra.mxu0 %v139
  %156 = vmatprep.subr.bf16.mxu0 0
  %157 = vmatpush1.bf16.msra.mxu0 %v138
  %158 = vmatprep.subr.bf16.mxu0 0
  %159 = vmatpush1.bf16.msra.mxu0 %v137
  %160 = vmatprep.subr.bf16.mxu0 0
  %161 = vmatpush1.bf16.msra.mxu0 %v136
  %162 = vmatprep.subr.bf16.mxu0 0
  %163 = vmatpush1.bf16.msra.mxu0 %v135
  %164 = vmatprep.subr.bf16.mxu0 0
  %165 = vmatpush1.bf16.msra.mxu0 %v134
  %166 = vmatprep.subr.bf16.mxu0 0
  %167 = vmatpush2.bf16.msra.mxu0 0
  %168 = vmatprep.subr.bf16.mxu0 0
  %169 = vmatpush2.bf16.msra.mxu0 0
  %170 = vmatprep.subr.bf16.mxu0 0
  %171 = vmatpush2.bf16.msra.mxu0 0
  %172 = vmatprep.subr.bf16.mxu0 0
  %173 = vmatpush2.bf16.msra.mxu0 0
  %174 = vmatprep.subr.bf16.mxu0 0
  %175 = vmatpush2.bf16.msra.mxu0 0
  %176 = vmatprep.subr.bf16.mxu0 0
  %177 = vmatpush2.bf16.msra.mxu0 0
  %178 = vmatprep.subr.bf16.mxu0 0
  %179 = vmatpush2.bf16.msra.mxu0 0
  %180 = vmatprep.subr.bf16.mxu0 0
  %181 = vmatpush2.bf16.msra.mxu0 0
  %182 = vmatprep.mubr.bf16.mxu0 0
  %183 = vmatmul.mubr.bf16.gmra.mxu0 %v86
  %v184 = vpop.f32.mrf.mxu0
  %v185 = vadd.f32 %v52, %v184
  %v186 = vpop.f32.mrf.mxu0
  %v187 = vpop.f32.mrf.mxu0
  %v188 = vadd.f32 %v52, %v187
  %v189 = vpop.f32.mrf.mxu0
  %190 = vmatprep.mubr.bf16.mxu0 0
  %191 = vmatmul.mubr.bf16.gmra.mxu0 %v87
  %v192 = vpop.f32.mrf.mxu0
  %v193 = vadd.f32 %v52, %v192
  %v194 = vpop.f32.mrf.mxu0
  %v195 = vpop.f32.mrf.mxu0
  %v196 = vadd.f32 %v52, %v195
  %v197 = vpop.f32.mrf.mxu0
  %198 = vmatprep.mubr.bf16.mxu0 0
  %199 = vmatmul.mubr.bf16.gmra.mxu0 %v88
  %v200 = vpop.f32.mrf.mxu0
  %v201 = vadd.f32 %v52, %v200
  %v202 = vpop.f32.mrf.mxu0
  %v203 = vpop.f32.mrf.mxu0
  %v204 = vadd.f32 %v52, %v203
  %v205 = vpop.f32.mrf.mxu0
  %206 = vmatprep.mubr.bf16.mxu0 0
  %207 = vmatmul.mubr.bf16.gmra.mxu0 %v89
  %v208 = vpop.f32.mrf.mxu0
  %v209 = vadd.f32 %v52, %v208
  %v210 = vpop.f32.mrf.mxu0
  %v211 = vpop.f32.mrf.mxu0
  %v212 = vadd.f32 %v52, %v211
  %v213 = vpop.f32.mrf.mxu0
  %214 = vmatprep.mubr.bf16.mxu0 0
  %215 = vmatmul.mubr.bf16.gmra.mxu0 %v90
  %v216 = vpop.f32.mrf.mxu0
  %v217 = vadd.f32 %v52, %v216
  %v218 = vpop.f32.mrf.mxu0
  %v219 = vpop.f32.mrf.mxu0
  %v220 = vadd.f32 %v52, %v219
  %v221 = vpop.f32.mrf.mxu0
  %222 = vmatprep.mubr.bf16.mxu0 0
  %223 = vmatmul.mubr.bf16.gmra.mxu0 %v91
  %v224 = vpop.f32.mrf.mxu0
  %v225 = vadd.f32 %v52, %v224
  %v226 = vpop.f32.mrf.mxu0
  %v227 = vpop.f32.mrf.mxu0
  %v228 = vadd.f32 %v52, %v227
  %v229 = vpop.f32.mrf.mxu0
  %230 = vmatprep.mubr.bf16.mxu0 0
  %231 = vmatmul.mubr.bf16.gmra.mxu0 %v92
  %v232 = vpop.f32.mrf.mxu0
  %v233 = vadd.f32 %v52, %v232
  %v234 = vpop.f32.mrf.mxu0
  %v235 = vpop.f32.mrf.mxu0
  %v236 = vadd.f32 %v52, %v235
  %v237 = vpop.f32.mrf.mxu0
  %238 = vmatprep.mubr.bf16.mxu0 0
  %239 = vmatmul.mubr.bf16.gmra.mxu0 %v93
  %v240 = vpop.f32.mrf.mxu0
  %v241 = vadd.f32 %v52, %v240
  %v242 = vpop.f32.mrf.mxu0
  %v243 = vpop.f32.mrf.mxu0
  %v244 = vadd.f32 %v52, %v243
  %v245 = vpop.f32.mrf.mxu0
  %246 = vdwg.mxu0
  %247 = vst [vmem:[%s3] sm:$0xff] %v185
  %248 = vst [vmem:[%s3 + $0x8] sm:$0xff] %v188
  %249 = vst [vmem:[%s3 + $0x10] sm:$0xff] %v193
  %250 = vst [vmem:[%s3 + $0x18] sm:$0xff] %v196
  %251 = vst [vmem:[%s3 + $0x20] sm:$0xff] %v201
  %252 = vst [vmem:[%s3 + $0x28] sm:$0xff] %v204
  %253 = vst [vmem:[%s3 + $0x30] sm:$0xff] %v209
  %254 = vst [vmem:[%s3 + $0x38] sm:$0xff] %v212
  %255 = vst [vmem:[%s3 + $0x40] sm:$0xff] %v217
  %256 = vst [vmem:[%s3 + $0x48] sm:$0xff] %v220
  %257 = vst [vmem:[%s3 + $0x50] sm:$0xff] %v225
  %258 = vst [vmem:[%s3 + $0x58] sm:$0xff] %v228
  %259 = vst [vmem:[%s3 + $0x60] sm:$0xff] %v233
  %260 = vst [vmem:[%s3 + $0x68] sm:$0xff] %v236
  %261 = vst [vmem:[%s3 + $0x70] sm:$0xff] %v241
  %262 = vst [vmem:[%s3 + $0x78] sm:$0xff] %v244
  // Predicated region
  $region14: #{detr_forward.2} parent=0 // pred_check
    _
  $region15: #{detr_forward.2} parent=0 // pred_check_branch
    %264 = sbr.rel (0) target = $region17
  $region16: #{detr_forward.2} parent=0 // pred_region
    _
  $region17: #{detr_forward.2} parent=0 // pred_fallthru
    _
  // Predicated region
  $region18: #{detr_forward.2} parent=0 // pred_check
    _
  $region19: #{detr_forward.2} parent=0 // pred_check_branch
    %266 = sbr.rel (0) target = $region21
  $region20: #{detr_forward.2} parent=0 // pred_region
    _
  $region21: #{detr_forward.2} parent=0 // pred_fallthru
    _

// kernel: detr_forward.3
$region0: #{detr_forward.3}
  #allocation0 [shape = 'u32[]', space=smem, size = 0x4, offset = 0x4, fixed_abs, tag = 'smem constant byte address 0x4 - core index']
  #allocation1 [shape = 'u32[144,128]{1,0:T(1,128)}', space=vmem, size = 0x12000, scoped, tag = 'internal scratch']
  %s0 = inlined_call_operand.vmem [shape: bf16[32,128], index: 0, kind: input, shape index: {}]
  %s1 = inlined_call_operand.vmem [shape: bf16[128,128], index: 1, kind: input, shape index: {}]
  %s2 = inlined_call_operand.vmem [shape: f32[1,128], index: 2, kind: input, shape index: {}]
  %s3 = inlined_call_operand.vmem [shape: bf16[128,128], index: 3, kind: input, shape index: {}]
  %s4 = inlined_call_operand.vmem [shape: f32[1,128], index: 4, kind: input, shape index: {}]
  %s5 = inlined_call_operand.vmem [shape: bf16[128,128], index: 5, kind: input, shape index: {}]
  %s6 = inlined_call_operand.vmem [shape: f32[1,128], index: 6, kind: input, shape index: {}]
  %s7 = inlined_call_operand.vmem [shape: bf16[128,128], index: 7, kind: input, shape index: {}]
  %s8 = inlined_call_operand.vmem [shape: f32[1,128], index: 8, kind: input, shape index: {}]
  %s9 = inlined_call_operand.vmem [shape: bf16[32,128], index: 9, kind: output, shape index: {0}]
  %s10 = inlined_call_operand.vmem [shape: bf16[32,128], index: 10, kind: output, shape index: {1}]
  %11 = xla_tuple %s9, %s10
  %s12 = sld [smem:[#allocation0]]
  $region54: #{detr_forward.3} parent=0
    _
  %s14 = ssub.s32 1, %s12
  %s15 = scalar_select 0, %s14, %s12
  // Predicated region
  $region2: #{detr_forward.3} parent=0 // pred_check
    _
  $region3: #{detr_forward.3} parent=0 // pred_check_branch
    %17 = sbr.rel (0) target = $region5
  $region4: #{detr_forward.3} parent=0 // pred_region
    _
  $region5: #{detr_forward.3} parent=0 // pred_fallthru
    _
  // Predicated region
  $region6: #{detr_forward.3} parent=0 // pred_check
    _
  $region7: #{detr_forward.3} parent=0 // pred_check_branch
    %19 = sbr.rel (0) target = $region9
  $region8: #{detr_forward.3} parent=0 // pred_region
    _
  $region9: #{detr_forward.3} parent=0 // pred_fallthru
    _
  // Predicated region
  $region10: #{detr_forward.3} parent=0 // pred_check
    _
  $region11: #{detr_forward.3} parent=0 // pred_check_branch
    %21 = sbr.rel (0) target = $region13
  $region12: #{detr_forward.3} parent=0 // pred_region
    _
  $region13: #{detr_forward.3} parent=0 // pred_fallthru
    _
  // Predicated region
  $region14: #{detr_forward.3} parent=0 // pred_check
    _
  $region15: #{detr_forward.3} parent=0 // pred_check_branch
    %23 = sbr.rel (0) target = $region17
  $region16: #{detr_forward.3} parent=0 // pred_region
    _
  $region17: #{detr_forward.3} parent=0 // pred_fallthru
    _
  // Predicated region
  $region18: #{detr_forward.3} parent=0 // pred_check
    _
  $region19: #{detr_forward.3} parent=0 // pred_check_branch
    %25 = sbr.rel (0) target = $region21
  $region20: #{detr_forward.3} parent=0 // pred_region
    _
  $region21: #{detr_forward.3} parent=0 // pred_fallthru
    _
  // Predicated region
  $region22: #{detr_forward.3} parent=0 // pred_check
    _
  $region23: #{detr_forward.3} parent=0 // pred_check_branch
    %27 = sbr.rel (0) target = $region25
  $region24: #{detr_forward.3} parent=0 // pred_region
    _
  $region25: #{detr_forward.3} parent=0 // pred_fallthru
    _
  // Predicated region
  $region26: #{detr_forward.3} parent=0 // pred_check
    _
  $region27: #{detr_forward.3} parent=0 // pred_check_branch
    %29 = sbr.rel (0) target = $region29
  $region28: #{detr_forward.3} parent=0 // pred_region
    _
  $region29: #{detr_forward.3} parent=0 // pred_fallthru
    _
  // Predicated region
  $region30: #{detr_forward.3} parent=0 // pred_check
    _
  $region31: #{detr_forward.3} parent=0 // pred_check_branch
    %31 = sbr.rel (0) target = $region33
  $region32: #{detr_forward.3} parent=0 // pred_region
    _
  $region33: #{detr_forward.3} parent=0 // pred_fallthru
    _
  // Predicated region
  $region34: #{detr_forward.3} parent=0 // pred_check
    _
  $region35: #{detr_forward.3} parent=0 // pred_check_branch
    %33 = sbr.rel (0) target = $region37
  $region36: #{detr_forward.3} parent=0 // pred_region
    _
  $region37: #{detr_forward.3} parent=0 // pred_fallthru
    _
  %v35 = vld [vmem:[%s0] sm:$0xf]
  %v36 = vld [vmem:[%s0 + $0x4] sm:$0xf]
  %v37 = vld [vmem:[%s0 + $0x8] sm:$0xf]
  %v38 = vld [vmem:[%s0 + $0xc] sm:$0xf]
  %v39 = vld [vmem:[%s1] sm:$0xf]
  %v40 = vld [vmem:[%s1 + $0x4] sm:$0xf]
  %v41 = vld [vmem:[%s1 + $0x8] sm:$0xf]
  %v42 = vld [vmem:[%s1 + $0xc] sm:$0xf]
  %v43 = vld [vmem:[%s1 + $0x10] sm:$0xf]
  %v44 = vld [vmem:[%s1 + $0x14] sm:$0xf]
  %v45 = vld [vmem:[%s1 + $0x18] sm:$0xf]
  %v46 = vld [vmem:[%s1 + $0x1c] sm:$0xf]
  %v47 = vld [vmem:[%s1 + $0x20] sm:$0xf]
  %v48 = vld [vmem:[%s1 + $0x24] sm:$0xf]
  %v49 = vld [vmem:[%s1 + $0x28] sm:$0xf]
  %v50 = vld [vmem:[%s1 + $0x2c] sm:$0xf]
  %v51 = vld [vmem:[%s1 + $0x30] sm:$0xf]
  %v52 = vld [vmem:[%s1 + $0x34] sm:$0xf]
  %v53 = vld [vmem:[%s1 + $0x38] sm:$0xf]
  %v54 = vld [vmem:[%s1 + $0x3c] sm:$0xf]
  %v55 = vld [vmem:[%s2] sm:$0x1]
  %v57 = vlaneseq
  %v58 = vshrl.u32 %v57, 7
  %v59 = vsub.s32 0, %v58
  %v60 = vrot.slane %v55, %v59
  %v66 = vunpack.c.l.b16 %v35
  %v67 = vunpack.c.l.b16 %v36
  %v68 = vunpack.c.l.b16 %v37
  %v69 = vunpack.c.l.b16 %v38
  %v70 = vpack.c.b16 %v67, %v66
  %v71 = vpack.c.b16 %v69, %v68
  %v90 = vunpack.c.l.b16 %v39
  %v91 = vunpack.c.l.b16 %v40
  %v92 = vunpack.c.l.b16 %v41
  %v93 = vunpack.c.l.b16 %v42
  %v94 = vunpack.c.l.b16 %v43
  %v95 = vunpack.c.l.b16 %v44
  %v96 = vunpack.c.l.b16 %v45
  %v97 = vunpack.c.l.b16 %v46
  %v98 = vunpack.c.l.b16 %v47
  %v99 = vunpack.c.l.b16 %v48
  %v100 = vunpack.c.l.b16 %v49
  %v101 = vunpack.c.l.b16 %v50
  %v102 = vunpack.c.l.b16 %v51
  %v103 = vunpack.c.l.b16 %v52
  %v104 = vunpack.c.l.b16 %v53
  %v105 = vunpack.c.l.b16 %v54
  %v106 = vpack.c.b16 %v91, %v90
  %v107 = vpack.c.b16 %v93, %v92
  %v108 = vpack.c.b16 %v95, %v94
  %v109 = vpack.c.b16 %v97, %v96
  %v110 = vpack.c.b16 %v99, %v98
  %v111 = vpack.c.b16 %v101, %v100
  %v112 = vpack.c.b16 %v103, %v102
  %v113 = vpack.c.b16 %v105, %v104
  %122 = vmatprep.subr.bf16.mxu0 0
  %123 = vmatpush1.bf16.msra.mxu0 %v113
  %124 = vmatprep.subr.bf16.mxu0 0
  %125 = vmatpush1.bf16.msra.mxu0 %v112
  %126 = vmatprep.subr.bf16.mxu0 0
  %127 = vmatpush1.bf16.msra.mxu0 %v111
  %128 = vmatprep.subr.bf16.mxu0 0
  %129 = vmatpush1.bf16.msra.mxu0 %v110
  %130 = vmatprep.subr.bf16.mxu0 0
  %131 = vmatpush1.bf16.msra.mxu0 %v109
  %132 = vmatprep.subr.bf16.mxu0 0
  %133 = vmatpush1.bf16.msra.mxu0 %v108
  %134 = vmatprep.subr.bf16.mxu0 0
  %135 = vmatpush1.bf16.msra.mxu0 %v107
  %136 = vmatprep.subr.bf16.mxu0 0
  %137 = vmatpush1.bf16.msra.mxu0 %v106
  %138 = vmatprep.subr.bf16.mxu0 0
  %139 = vmatpush2.bf16.msra.mxu0 0
  %140 = vmatprep.subr.bf16.mxu0 0
  %141 = vmatpush2.bf16.msra.mxu0 0
  %142 = vmatprep.subr.bf16.mxu0 0
  %143 = vmatpush2.bf16.msra.mxu0 0
  %144 = vmatprep.subr.bf16.mxu0 0
  %145 = vmatpush2.bf16.msra.mxu0 0
  %146 = vmatprep.subr.bf16.mxu0 0
  %147 = vmatpush2.bf16.msra.mxu0 0
  %148 = vmatprep.subr.bf16.mxu0 0
  %149 = vmatpush2.bf16.msra.mxu0 0
  %150 = vmatprep.subr.bf16.mxu0 0
  %151 = vmatpush2.bf16.msra.mxu0 0
  %152 = vmatprep.subr.bf16.mxu0 0
  %153 = vmatpush2.bf16.msra.mxu0 0
  %154 = vmatprep.mubr.bf16.mxu0 0
  %155 = vmatmul.mubr.bf16.gmra.mxu0 %v70
  %v156 = vpop.f32.mrf.mxu0
  %v157 = vadd.f32 %v60, %v156
  %v158 = vpop.f32.mrf.mxu0
  %v159 = vpop.f32.mrf.mxu0
  %v160 = vadd.f32 %v60, %v159
  %v161 = vpop.f32.mrf.mxu0
  %162 = vmatprep.mubr.bf16.mxu0 0
  %163 = vmatmul.mubr.bf16.gmra.mxu0 %v71
  %v164 = vpop.f32.mrf.mxu0
  %v165 = vadd.f32 %v60, %v164
  %v166 = vpop.f32.mrf.mxu0
  %v167 = vpop.f32.mrf.mxu0
  %v168 = vadd.f32 %v60, %v167
  %v169 = vpop.f32.mrf.mxu0
  %170 = vdwg.mxu0
  %v171 = vpack.c.bf16 %v160, %v157
  %v172 = vpack.c.bf16 %v168, %v165
  %v175 = vunpack.c.l.b16 %v171
  %v176 = vunpack.c.h.b16 %v171
  %v177 = vunpack.c.l.b16 %v172
  %v178 = vunpack.c.h.b16 %v172
  %v179 = vpack.c.b16 %v175, %v175
  %v180 = vpack.c.b16 %v176, %v176
  %v181 = vpack.c.b16 %v177, %v177
  %v182 = vpack.c.b16 %v178, %v178
  %187 = vst [vmem:[%s9] sm:$0xf] %v179
  %188 = vst [vmem:[%s9 + $0x4] sm:$0xf] %v180
  %189 = vst [vmem:[%s9 + $0x8] sm:$0xf] %v181
  %190 = vst [vmem:[%s9 + $0xc] sm:$0xf] %v182
  %v191 = vld [vmem:[%s3] sm:$0xf]
  %v192 = vld [vmem:[%s3 + $0x4] sm:$0xf]
  %v193 = vld [vmem:[%s3 + $0x8] sm:$0xf]
  %v194 = vld [vmem:[%s3 + $0xc] sm:$0xf]
  %v195 = vld [vmem:[%s3 + $0x10] sm:$0xf]
  %v196 = vld [vmem:[%s3 + $0x14] sm:$0xf]
  %v197 = vld [vmem:[%s3 + $0x18] sm:$0xf]
  %v198 = vld [vmem:[%s3 + $0x1c] sm:$0xf]
  %v199 = vld [vmem:[%s3 + $0x20] sm:$0xf]
  %v200 = vld [vmem:[%s3 + $0x24] sm:$0xf]
  %v201 = vld [vmem:[%s3 + $0x28] sm:$0xf]
  %v202 = vld [vmem:[%s3 + $0x2c] sm:$0xf]
  %v203 = vld [vmem:[%s3 + $0x30] sm:$0xf]
  %v204 = vld [vmem:[%s3 + $0x34] sm:$0xf]
  %v205 = vld [vmem:[%s3 + $0x38] sm:$0xf]
  %v206 = vld [vmem:[%s3 + $0x3c] sm:$0xf]
  %v207 = vld [vmem:[%s4] sm:$0x1]
  %v209 = vlaneseq
  %v210 = vshrl.u32 %v209, 7
  %v211 = vsub.s32 0, %v210
  %v212 = vrot.slane %v207, %v211
  %v230 = vunpack.c.l.b16 %v191
  %v231 = vunpack.c.l.b16 %v192
  %v232 = vunpack.c.l.b16 %v193
  %v233 = vunpack.c.l.b16 %v194
  %v234 = vunpack.c.l.b16 %v195
  %v235 = vunpack.c.l.b16 %v196
  %v236 = vunpack.c.l.b16 %v197
  %v237 = vunpack.c.l.b16 %v198
  %v238 = vunpack.c.l.b16 %v199
  %v239 = vunpack.c.l.b16 %v200
  %v240 = vunpack.c.l.b16 %v201
  %v241 = vunpack.c.l.b16 %v202
  %v242 = vunpack.c.l.b16 %v203
  %v243 = vunpack.c.l.b16 %v204
  %v244 = vunpack.c.l.b16 %v205
  %v245 = vunpack.c.l.b16 %v206
  %v246 = vpack.c.b16 %v231, %v230
  %v247 = vpack.c.b16 %v233, %v232
  %v248 = vpack.c.b16 %v235, %v234
  %v249 = vpack.c.b16 %v237, %v236
  %v250 = vpack.c.b16 %v239, %v238
  %v251 = vpack.c.b16 %v241, %v240
  %v252 = vpack.c.b16 %v243, %v242
  %v253 = vpack.c.b16 %v245, %v244
  %262 = vmatprep.subr.bf16.mxu0 0
  %263 = vmatpush1.bf16.msra.mxu0 %v253
  %264 = vmatprep.subr.bf16.mxu0 0
  %265 = vmatpush1.bf16.msra.mxu0 %v252
  %266 = vmatprep.subr.bf16.mxu0 0
  %267 = vmatpush1.bf16.msra.mxu0 %v251
  %268 = vmatprep.subr.bf16.mxu0 0
  %269 = vmatpush1.bf16.msra.mxu0 %v250
  %270 = vmatprep.subr.bf16.mxu0 0
  %271 = vmatpush1.bf16.msra.mxu0 %v249
  %272 = vmatprep.subr.bf16.mxu0 0
  %273 = vmatpush1.bf16.msra.mxu0 %v248
  %274 = vmatprep.subr.bf16.mxu0 0
  %275 = vmatpush1.bf16.msra.mxu0 %v247
  %276 = vmatprep.subr.bf16.mxu0 0
  %277 = vmatpush1.bf16.msra.mxu0 %v246
  %278 = vmatprep.subr.bf16.mxu0 0
  %279 = vmatpush2.bf16.msra.mxu0 0
  %280 = vmatprep.subr.bf16.mxu0 0
  %281 = vmatpush2.bf16.msra.mxu0 0
  %282 = vmatprep.subr.bf16.mxu0 0
  %283 = vmatpush2.bf16.msra.mxu0 0
  %284 = vmatprep.subr.bf16.mxu0 0
  %285 = vmatpush2.bf16.msra.mxu0 0
  %286 = vmatprep.subr.bf16.mxu0 0
  %287 = vmatpush2.bf16.msra.mxu0 0
  %288 = vmatprep.subr.bf16.mxu0 0
  %289 = vmatpush2.bf16.msra.mxu0 0
  %290 = vmatprep.subr.bf16.mxu0 0
  %291 = vmatpush2.bf16.msra.mxu0 0
  %292 = vmatprep.subr.bf16.mxu0 0
  %293 = vmatpush2.bf16.msra.mxu0 0
  %294 = vmatprep.mubr.bf16.mxu0 0
  %295 = vmatmul.mubr.bf16.gmra.mxu0 %v70
  %v296 = vpop.f32.mrf.mxu0
  %v297 = vadd.f32 %v212, %v296
  %v298 = vpop.f32.mrf.mxu0
  %v299 = vpop.f32.mrf.mxu0
  %v300 = vadd.f32 %v212, %v299
  %v301 = vpop.f32.mrf.mxu0
  %302 = vmatprep.mubr.bf16.mxu0 0
  %303 = vmatmul.mubr.bf16.gmra.mxu0 %v71
  %v304 = vpop.f32.mrf.mxu0
  %v305 = vadd.f32 %v212, %v304
  %v306 = vpop.f32.mrf.mxu0
  %v307 = vpop.f32.mrf.mxu0
  %v308 = vadd.f32 %v212, %v307
  %v309 = vpop.f32.mrf.mxu0
  %310 = vdwg.mxu0
  %v311 = vmax.f32 %v297, 0.0
  %v312 = vmax.f32 %v300, 0.0
  %v313 = vmax.f32 %v305, 0.0
  %v314 = vmax.f32 %v308, 0.0
  %v315 = vpack.c.bf16 %v312, %v311
  %v316 = vpack.c.bf16 %v314, %v313
  %v317 = vld [vmem:[%s5] sm:$0xf]
  %v318 = vld [vmem:[%s5 + $0x4] sm:$0xf]
  %v319 = vld [vmem:[%s5 + $0x8] sm:$0xf]
  %v320 = vld [vmem:[%s5 + $0xc] sm:$0xf]
  %v321 = vld [vmem:[%s5 + $0x10] sm:$0xf]
  %v322 = vld [vmem:[%s5 + $0x14] sm:$0xf]
  %v323 = vld [vmem:[%s5 + $0x18] sm:$0xf]
  %v324 = vld [vmem:[%s5 + $0x1c] sm:$0xf]
  %v325 = vld [vmem:[%s5 + $0x20] sm:$0xf]
  %v326 = vld [vmem:[%s5 + $0x24] sm:$0xf]
  %v327 = vld [vmem:[%s5 + $0x28] sm:$0xf]
  %v328 = vld [vmem:[%s5 + $0x2c] sm:$0xf]
  %v329 = vld [vmem:[%s5 + $0x30] sm:$0xf]
  %v330 = vld [vmem:[%s5 + $0x34] sm:$0xf]
  %v331 = vld [vmem:[%s5 + $0x38] sm:$0xf]
  %v332 = vld [vmem:[%s5 + $0x3c] sm:$0xf]
  %v333 = vld [vmem:[%s6] sm:$0x1]
  %v335 = vlaneseq
  %v336 = vshrl.u32 %v335, 7
  %v337 = vsub.s32 0, %v336
  %v338 = vrot.slane %v333, %v337
  %v356 = vunpack.c.l.b16 %v317
  %v357 = vunpack.c.l.b16 %v318
  %v358 = vunpack.c.l.b16 %v319
  %v359 = vunpack.c.l.b16 %v320
  %v360 = vunpack.c.l.b16 %v321
  %v361 = vunpack.c.l.b16 %v322
  %v362 = vunpack.c.l.b16 %v323
  %v363 = vunpack.c.l.b16 %v324
  %v364 = vunpack.c.l.b16 %v325
  %v365 = vunpack.c.l.b16 %v326
  %v366 = vunpack.c.l.b16 %v327
  %v367 = vunpack.c.l.b16 %v328
  %v368 = vunpack.c.l.b16 %v329
  %v369 = vunpack.c.l.b16 %v330
  %v370 = vunpack.c.l.b16 %v331
  %v371 = vunpack.c.l.b16 %v332
  %v372 = vpack.c.b16 %v357, %v356
  %v373 = vpack.c.b16 %v359, %v358
  %v374 = vpack.c.b16 %v361, %v360
  %v375 = vpack.c.b16 %v363, %v362
  %v376 = vpack.c.b16 %v365, %v364
  %v377 = vpack.c.b16 %v367, %v366
  %v378 = vpack.c.b16 %v369, %v368
  %v379 = vpack.c.b16 %v371, %v370
  %388 = vmatprep.subr.bf16.mxu0 0
  %389 = vmatpush1.bf16.msra.mxu0 %v379
  %390 = vmatprep.subr.bf16.mxu0 0
  %391 = vmatpush1.bf16.msra.mxu0 %v378
  %392 = vmatprep.subr.bf16.mxu0 0
  %393 = vmatpush1.bf16.msra.mxu0 %v377
  %394 = vmatprep.subr.bf16.mxu0 0
  %395 = vmatpush1.bf16.msra.mxu0 %v376
  %396 = vmatprep.subr.bf16.mxu0 0
  %397 = vmatpush1.bf16.msra.mxu0 %v375
  %398 = vmatprep.subr.bf16.mxu0 0
  %399 = vmatpush1.bf16.msra.mxu0 %v374
  %400 = vmatprep.subr.bf16.mxu0 0
  %401 = vmatpush1.bf16.msra.mxu0 %v373
  %402 = vmatprep.subr.bf16.mxu0 0
  %403 = vmatpush1.bf16.msra.mxu0 %v372
  %404 = vmatprep.subr.bf16.mxu0 0
  %405 = vmatpush2.bf16.msra.mxu0 0
  %406 = vmatprep.subr.bf16.mxu0 0
  %407 = vmatpush2.bf16.msra.mxu0 0
  %408 = vmatprep.subr.bf16.mxu0 0
  %409 = vmatpush2.bf16.msra.mxu0 0
  %410 = vmatprep.subr.bf16.mxu0 0
  %411 = vmatpush2.bf16.msra.mxu0 0
  %412 = vmatprep.subr.bf16.mxu0 0
  %413 = vmatpush2.bf16.msra.mxu0 0
  %414 = vmatprep.subr.bf16.mxu0 0
  %415 = vmatpush2.bf16.msra.mxu0 0
  %416 = vmatprep.subr.bf16.mxu0 0
  %417 = vmatpush2.bf16.msra.mxu0 0
  %418 = vmatprep.subr.bf16.mxu0 0
  %419 = vmatpush2.bf16.msra.mxu0 0
  %420 = vmatprep.mubr.bf16.mxu0 0
  %421 = vmatmul.mubr.bf16.gmra.mxu0 %v315
  %v422 = vpop.f32.mrf.mxu0
  %v423 = vadd.f32 %v338, %v422
  %v424 = vpop.f32.mrf.mxu0
  %v425 = vpop.f32.mrf.mxu0
  %v426 = vadd.f32 %v338, %v425
  %v427 = vpop.f32.mrf.mxu0
  %428 = vmatprep.mubr.bf16.mxu0 0
  %429 = vmatmul.mubr.bf16.gmra.mxu0 %v316
  %v430 = vpop.f32.mrf.mxu0
  %v431 = vadd.f32 %v338, %v430
  %v432 = vpop.f32.mrf.mxu0
  %v433 = vpop.f32.mrf.mxu0
  %v434 = vadd.f32 %v338, %v433
  %v435 = vpop.f32.mrf.mxu0
  %436 = vdwg.mxu0
  %v437 = vmax.f32 %v423, 0.0
  %v438 = vmax.f32 %v426, 0.0
  %v439 = vmax.f32 %v431, 0.0
  %v440 = vmax.f32 %v434, 0.0
  %v441 = vpack.c.bf16 %v438, %v437
  %v442 = vpack.c.bf16 %v440, %v439
  %v443 = vld [vmem:[%s7] sm:$0xf]
  %v444 = vld [vmem:[%s7 + $0x4] sm:$0xf]
  %v445 = vld [vmem:[%s7 + $0x8] sm:$0xf]
  %v446 = vld [vmem:[%s7 + $0xc] sm:$0xf]
  %v447 = vld [vmem:[%s7 + $0x10] sm:$0xf]
  %v448 = vld [vmem:[%s7 + $0x14] sm:$0xf]
  %v449 = vld [vmem:[%s7 + $0x18] sm:$0xf]
  %v450 = vld [vmem:[%s7 + $0x1c] sm:$0xf]
  %v451 = vld [vmem:[%s7 + $0x20] sm:$0xf]
  %v452 = vld [vmem:[%s7 + $0x24] sm:$0xf]
  %v453 = vld [vmem:[%s7 + $0x28] sm:$0xf]
  %v454 = vld [vmem:[%s7 + $0x2c] sm:$0xf]
  %v455 = vld [vmem:[%s7 + $0x30] sm:$0xf]
  %v456 = vld [vmem:[%s7 + $0x34] sm:$0xf]
  %v457 = vld [vmem:[%s7 + $0x38] sm:$0xf]
  %v458 = vld [vmem:[%s7 + $0x3c] sm:$0xf]
  %v459 = vld [vmem:[%s8] sm:$0x1]
  %v461 = vlaneseq
  %v462 = vshrl.u32 %v461, 7
  %v463 = vsub.s32 0, %v462
  %v464 = vrot.slane %v459, %v463
  %v482 = vunpack.c.l.b16 %v443
  %v483 = vunpack.c.l.b16 %v444
  %v484 = vunpack.c.l.b16 %v445
  %v485 = vunpack.c.l.b16 %v446
  %v486 = vunpack.c.l.b16 %v447
  %v487 = vunpack.c.l.b16 %v448
  %v488 = vunpack.c.l.b16 %v449
  %v489 = vunpack.c.l.b16 %v450
  %v490 = vunpack.c.l.b16 %v451
  %v491 = vunpack.c.l.b16 %v452
  %v492 = vunpack.c.l.b16 %v453
  %v493 = vunpack.c.l.b16 %v454
  %v494 = vunpack.c.l.b16 %v455
  %v495 = vunpack.c.l.b16 %v456
  %v496 = vunpack.c.l.b16 %v457
  %v497 = vunpack.c.l.b16 %v458
  %v498 = vpack.c.b16 %v483, %v482
  %v499 = vpack.c.b16 %v485, %v484
  %v500 = vpack.c.b16 %v487, %v486
  %v501 = vpack.c.b16 %v489, %v488
  %v502 = vpack.c.b16 %v491, %v490
  %v503 = vpack.c.b16 %v493, %v492
  %v504 = vpack.c.b16 %v495, %v494
  %v505 = vpack.c.b16 %v497, %v496
  %514 = vmatprep.subr.bf16.mxu0 0
  %515 = vmatpush1.bf16.msra.mxu0 %v505
  %516 = vmatprep.subr.bf16.mxu0 0
  %517 = vmatpush1.bf16.msra.mxu0 %v504
  %518 = vmatprep.subr.bf16.mxu0 0
  %519 = vmatpush1.bf16.msra.mxu0 %v503
  %520 = vmatprep.subr.bf16.mxu0 0
  %521 = vmatpush1.bf16.msra.mxu0 %v502
  %522 = vmatprep.subr.bf16.mxu0 0
  %523 = vmatpush1.bf16.msra.mxu0 %v501
  %524 = vmatprep.subr.bf16.mxu0 0
  %525 = vmatpush1.bf16.msra.mxu0 %v500
  %526 = vmatprep.subr.bf16.mxu0 0
  %527 = vmatpush1.bf16.msra.mxu0 %v499
  %528 = vmatprep.subr.bf16.mxu0 0
  %529 = vmatpush1.bf16.msra.mxu0 %v498
  %530 = vmatprep.subr.bf16.mxu0 0
  %531 = vmatpush2.bf16.msra.mxu0 0
  %532 = vmatprep.subr.bf16.mxu0 0
  %533 = vmatpush2.bf16.msra.mxu0 0
  %534 = vmatprep.subr.bf16.mxu0 0
  %535 = vmatpush2.bf16.msra.mxu0 0
  %536 = vmatprep.subr.bf16.mxu0 0
  %537 = vmatpush2.bf16.msra.mxu0 0
  %538 = vmatprep.subr.bf16.mxu0 0
  %539 = vmatpush2.bf16.msra.mxu0 0
  %540 = vmatprep.subr.bf16.mxu0 0
  %541 = vmatpush2.bf16.msra.mxu0 0
  %542 = vmatprep.subr.bf16.mxu0 0
  %543 = vmatpush2.bf16.msra.mxu0 0
  %544 = vmatprep.subr.bf16.mxu0 0
  %545 = vmatpush2.bf16.msra.mxu0 0
  %546 = vmatprep.mubr.bf16.mxu0 0
  %547 = vmatmul.mubr.bf16.gmra.mxu0 %v441
  %v548 = vpop.f32.mrf.mxu0
  %v549 = vadd.f32 %v464, %v548
  %v550 = vpop.f32.mrf.mxu0
  %v551 = vpop.f32.mrf.mxu0
  %v552 = vadd.f32 %v464, %v551
  %v553 = vpop.f32.mrf.mxu0
  %554 = vmatprep.mubr.bf16.mxu0 0
  %555 = vmatmul.mubr.bf16.gmra.mxu0 %v442
  %v556 = vpop.f32.mrf.mxu0
  %v557 = vadd.f32 %v464, %v556
  %v558 = vpop.f32.mrf.mxu0
  %v559 = vpop.f32.mrf.mxu0
  %v560 = vadd.f32 %v464, %v559
  %v561 = vpop.f32.mrf.mxu0
  %562 = vdwg.mxu0
  %v563 = vpack.c.bf16 %v552, %v549
  %v564 = vpack.c.bf16 %v560, %v557
  %v567 = vunpack.c.l.b16 %v563
  %v568 = vunpack.c.h.b16 %v563
  %v569 = vunpack.c.l.b16 %v564
  %v570 = vunpack.c.h.b16 %v564
  %v571 = vpack.c.b16 %v567, %v567
  %v572 = vpack.c.b16 %v568, %v568
  %v573 = vpack.c.b16 %v569, %v569
  %v574 = vpack.c.b16 %v570, %v570
  %579 = vst [vmem:[%s10] sm:$0xf] %v571
  %580 = vst [vmem:[%s10 + $0x4] sm:$0xf] %v572
  %581 = vst [vmem:[%s10 + $0x8] sm:$0xf] %v573
  %582 = vst [vmem:[%s10 + $0xc] sm:$0xf] %v574
  // Predicated region
  $region38: #{detr_forward.3} parent=0 // pred_check
    _
  $region39: #{detr_forward.3} parent=0 // pred_check_branch
    %584 = sbr.rel (0) target = $region41
  $region40: #{detr_forward.3} parent=0 // pred_region
    _
  $region41: #{detr_forward.3} parent=0 // pred_fallthru
    _
  // Predicated region
  $region42: #{detr_forward.3} parent=0 // pred_check
    _
  $region43: #{detr_forward.3} parent=0 // pred_check_branch
    %586 = sbr.rel (0) target = $region45
  $region44: #{detr_forward.3} parent=0 // pred_region
    _
  $region45: #{detr_forward.3} parent=0 // pred_fallthru
    _
  // Predicated region
  $region46: #{detr_forward.3} parent=0 // pred_check
    _
  $region47: #{detr_forward.3} parent=0 // pred_check_branch
    %588 = sbr.rel (0) target = $region49
  $region48: #{detr_forward.3} parent=0 // pred_region
    _
  $region49: #{detr_forward.3} parent=0 // pred_fallthru
    _
  // Predicated region
  $region50: #{detr_forward.3} parent=0 // pred_check
    _
  $region51: #{detr_forward.3} parent=0 // pred_check_branch
    %590 = sbr.rel (0) target = $region53
  $region52: #{detr_forward.3} parent=0 // pred_region
    _
  $region53: #{detr_forward.3} parent=0 // pred_fallthru
    _

</llo_original>
